<compile_context>
chip_gen: v6e
topology: v6e:2x2x1
jax: 0.10.0
libtpu: 0.0.40
codegen_flags: <defaults>
</compile_context>

<pallas_src>
import functools
import math

import jax
import jax.numpy as jnp
from jax.experimental import pallas as pl
from jax.experimental.pallas import tpu as pltpu


def _erf(x):
    # Abramowitz & Stegun 7.1.26 polynomial erf, |abs error| <= 1.5e-7 — built only
    # from ops with guaranteed Mosaic lowerings (the exp goes to the EUP slot).
    # TODO(synk): switch to jax.lax.erf once its Mosaic lowering is guaranteed
    # across JAX versions.
    a1, a2, a3, a4, a5 = (0.254829592, -0.284496736, 1.421413741,
                          -1.453152027, 1.061405429)
    p = 0.3275911
    sign = jnp.where(x >= 0.0, 1.0, -1.0)
    ax = jnp.abs(x)
    t = 1.0 / (1.0 + p * ax)
    poly = ((((a5 * t + a4) * t + a3) * t + a2) * t + a1) * t
    return sign * (1.0 - poly * jnp.exp(-ax * ax))


def _transform_kernel(x_ref, w_ref, b_ref, g_ref, beta_ref, o_ref, *,
                      eps, real_h, sub_rows):
    # x_ref   : (TM, Hp)  streamed input rows (activation dtype)
    # w_ref   : (Hp, Hp)  dense weight, [out, in] layout (VMEM-resident)
    # b_ref   : (1, Hp)   dense bias
    # g_ref   : (1, Hp)   LayerNorm gamma
    # beta_ref: (1, Hp)   LayerNorm beta
    # o_ref   : (TM, Hp)
    tm = x_ref.shape[0]
    nsub = tm // sub_rows  # static

    w = w_ref[...]
    bias = b_ref[...].astype(jnp.float32)
    gamma = g_ref[...].astype(jnp.float32)
    beta = beta_ref[...].astype(jnp.float32)
    inv_h = 1.0 / float(real_h)
    inv_sqrt2 = 1.0 / math.sqrt(2.0)

    # Sub-tiles are data-independent, so the MXU dot of one sub-tile can overlap the
    # GELU/LayerNorm epilogue (VPU + EUP exp/rsqrt + XLU reductions) of another.
    # Note: when N % TM != 0 the last grid block contains padded rows; LayerNorm is
    # strictly per-row and out-of-bounds writes are clipped, so results are correct.
    for j in range(nsub):
        r0 = j * sub_rows  # static, 128-aligned when tm >= 128
        x = x_ref[r0:r0 + sub_rows, :]
        # x @ W^T with W kept in [out, in] layout: contract dim 1 of both operands,
        # f32 accumulation on the MXU.
        h = jax.lax.dot_general(
            x, w,
            dimension_numbers=(((1,), (1,)), ((), ())),
            preferred_element_type=jnp.float32)
        h = h + bias

        # Exact-form GELU (HF ACT2FN['gelu']): 0.5*x*(1+erf(x/sqrt(2))).
        h = 0.5 * h * (1.0 + _erf(h * inv_sqrt2))

        # One-pass LayerNorm statistics in f32 over the real hidden width.
        # Padded lanes hold exactly 0 (zero x cols / W rows / bias), so they do not
        # perturb the sums; the two reductions are independent and can co-issue.
        s1 = jnp.sum(h, axis=-1, keepdims=True)
        s2 = jnp.sum(h * h, axis=-1, keepdims=True)
        mean = s1 * inv_h
        var = s2 * inv_h - mean * mean
        inv = jax.lax.rsqrt(var + eps)
        y = (h - mean) * inv * gamma + beta   # padded lanes: gamma = beta = 0 -> 0
        o_ref[r0:r0 + sub_rows, :] = y.astype(o_ref.dtype)


def _round_up(x, m):
    return ((x + m - 1) // m) * m


def bert_prediction_head_transform(hidden_states, dense_weight, dense_bias,
                                   ln_gamma, ln_beta, *, eps=1e-12,
                                   row_tile=512, mxu_dtype=None):
    """LayerNorm(gelu(hidden_states @ W^T + b)); W is nn.Linear's [out, in] weight.

    hidden_states: (..., H)
    dense_weight : (H, H)
    dense_bias, ln_gamma, ln_beta: (H,)
    mxu_dtype    : dtype fed to the MXU (default: the activation dtype). Pass
                   jnp.bfloat16 to force the native-rate MXU path for f32 inputs.
    """
    orig_shape = hidden_states.shape
    H = orig_shape[-1]
    out_dtype = hidden_states.dtype
    x = hidden_states.reshape(-1, H)
    N = x.shape[0]

    if mxu_dtype is None:
        mxu_dtype = out_dtype
    x = x.astype(mxu_dtype)
    w = dense_weight.astype(mxu_dtype)   # [out, in]; never transposed in the wrapper

    # Lane density: pad the hidden axis to a multiple of 128 so every store is a
    # full-lane vst (real BERT H = 768 / 1024 needs no padding).
    Hp = max(128, _round_up(H, 128))
    if Hp != H:
        x = jnp.pad(x, ((0, 0), (0, Hp - H)))
        w = jnp.pad(w, ((0, Hp - H), (0, Hp - H)))
        dense_bias = jnp.pad(dense_bias, (0, Hp - H))
        ln_gamma = jnp.pad(ln_gamma, (0, Hp - H))
        ln_beta = jnp.pad(ln_beta, (0, Hp - H))

    b2 = dense_bias.reshape(1, Hp)
    g2 = ln_gamma.reshape(1, Hp)
    bt2 = ln_beta.reshape(1, Hp)

    x_bytes = x.dtype.itemsize
    o_bytes = jnp.zeros((), out_dtype).dtype.itemsize

    # Explicit VMEM budget (generation-aware, conservative fallback = v7x per-TC).
    try:
        vmem_cap = int(pltpu.get_tpu_info().vmem_capacity_bytes)
    except Exception:
        vmem_cap = 64 << 20
    vmem_limit = min(int(0.75 * vmem_cap), 100 << 20)

    weight_bytes = 2 * Hp * Hp * x_bytes   # assume the resident weight is double-buffered
    if weight_bytes > int(0.7 * vmem_limit):
        # TODO(synk): add a K-tiled fallback (second grid axis over the contraction
        # dim, f32 accumulator scratch, GELU/LN in the last-k finalize) for hidden
        # sizes whose resident weight no longer fits VMEM (v7x, H >~ 2300 f32).
        raise NotImplementedError(
            f"hidden_size={H}: resident (H, H) weight ({weight_bytes} B) exceeds the "
            f"VMEM budget ({vmem_limit} B); K-tiled path not implemented.")

    # Row tile: large for DMA/compute overlap, but >= 4 grid steps when N is big
    # enough so both v7x TensorCores get work and the pipeline has depth.
    if N <= 256:
        tm = N
    else:
        tm = min(row_tile, max(128, _round_up(pl.cdiv(N, 4), 8)))
    # Auto-shrink the row tile if the estimated working set would overflow VMEM
    # (double-buffered input + output row tiles, resident weight, small vectors).
    def _working_set(t):
        return weight_bytes + 2 * t * Hp * (x_bytes + o_bytes) + 6 * Hp * 4
    while tm > 64 and _working_set(tm) > int(0.8 * vmem_limit):
        tm = _round_up(tm // 2, 8)
    tm = min(tm, N)

    sub_rows = 128 if (tm % 128 == 0 and tm >= 128) else tm
    grid = (pl.cdiv(N, tm),)

    kernel = functools.partial(_transform_kernel, eps=eps, real_h=H,
                               sub_rows=sub_rows)

    out = pl.pallas_call(
        kernel,
        out_shape=jax.ShapeDtypeStruct((N, Hp), out_dtype),
        grid_spec=pltpu.PrefetchScalarGridSpec(
            num_scalar_prefetch=0,
            grid=grid,
            in_specs=[
                pl.BlockSpec((tm, Hp), lambda i: (i, 0)),   # streamed activation rows
                # The blocks below are grid-invariant (constant index_map), so they
                # stay VMEM-resident and are not re-fetched across grid steps.
                pl.BlockSpec((Hp, Hp), lambda i: (0, 0)),   # dense weight [out, in]
                pl.BlockSpec((1, Hp), lambda i: (0, 0)),    # dense bias
                pl.BlockSpec((1, Hp), lambda i: (0, 0)),    # LN gamma
                pl.BlockSpec((1, Hp), lambda i: (0, 0)),    # LN beta
            ],
            out_specs=pl.BlockSpec((tm, Hp), lambda i: (i, 0)),
        ),
        compiler_params=pltpu.CompilerParams(
            dimension_semantics=("parallel",),   # rows are independent
            vmem_limit_bytes=vmem_limit,
        ),
    )(x, w, b2, g2, bt2)

    if Hp != H:
        out = out[:, :H]
    return out.reshape(orig_shape)


if __name__ == "__main__":
    # Small shapes consistent with the module: batch=2, seq=8, hidden=32.
    B, S, H = 2, 8, 32
    key = jax.random.PRNGKey(0)
    k_x, k_w, k_b, k_g, k_beta = jax.random.split(key, 5)

    hidden_states = jax.random.normal(k_x, (B, S, H), dtype=jnp.float32)

    # Deterministic synthetic params for nn.Linear(H, H) + BertLayerNorm(H).
    bound = 1.0 / math.sqrt(H)
    dense_weight = jax.random.uniform(k_w, (H, H), minval=-bound, maxval=bound,
                                      dtype=jnp.float32)
    dense_bias = jax.random.uniform(k_b, (H,), minval=-bound, maxval=bound,
                                    dtype=jnp.float32)
    ln_gamma = 1.0 + 0.05 * jax.random.normal(k_g, (H,), dtype=jnp.float32)
    ln_beta = 0.05 * jax.random.normal(k_beta, (H,), dtype=jnp.float32)
    eps = 1e-12

    # Pure-JAX reference with the true erf GELU (HF 'gelu').
    def ref_fn(xx):
        h = xx @ dense_weight.T + dense_bias
        h = 0.5 * h * (1.0 + jax.lax.erf(h * (1.0 / math.sqrt(2.0))))
        mean = jnp.mean(h, axis=-1, keepdims=True)
        var = jnp.mean((h - mean) ** 2, axis=-1, keepdims=True)
        y = (h - mean) * jax.lax.rsqrt(var + eps)
        return y * ln_gamma + ln_beta

    ref = ref_fn(hidden_states)

    # f32 path (tight numerical check).
    out = bert_prediction_head_transform(hidden_states, dense_weight, dense_bias,
                                         ln_gamma, ln_beta, eps=eps)
    out = jax.block_until_ready(out)
    assert out.shape == (B, S, H)
    assert jnp.allclose(out, ref, atol=1e-4, rtol=1e-4), float(
        jnp.max(jnp.abs(out - ref)))

    # bf16 MXU fast path (production setting; looser tolerance).
    out_bf16 = bert_prediction_head_transform(hidden_states, dense_weight,
                                              dense_bias, ln_gamma, ln_beta,
                                              eps=eps, mxu_dtype=jnp.bfloat16)
    out_bf16 = jax.block_until_ready(out_bf16)
    assert jnp.allclose(out_bf16.astype(jnp.float32), ref, atol=5e-2, rtol=5e-2)

    print("KERNEL_OK")
</pallas_src>

<mosaic_0001>
module attributes {stable_mosaic.version = 11 : i64} {
  func.func @_transform_kernel(%arg0: i32, %arg1: memref<16x128xf32, #tpu.memory_space<vmem>>, %arg2: memref<128x128xf32, #tpu.memory_space<vmem>>, %arg3: memref<1x128xf32, #tpu.memory_space<vmem>>, %arg4: memref<1x128xf32, #tpu.memory_space<vmem>>, %arg5: memref<1x128xf32, #tpu.memory_space<vmem>>, %arg6: memref<16x128xf32, #tpu.memory_space<vmem>>) attributes {dimension_semantics = [#tpu.dimension_semantics<parallel>], iteration_bounds = array<i64: 1>, scalar_prefetch = 0 : i64, scratch_operands = 0 : i64, tpu.core_type = #tpu.core_type<tc>, window_params = [{transform_indices = @transform_0, window_bounds = array<i64: 16, 128>}, {pipeline_mode = #tpu.pipeline_mode<synchronous>, transform_indices = @transform_1, window_bounds = array<i64: 128, 128>}, {pipeline_mode = #tpu.pipeline_mode<synchronous>, transform_indices = @transform_2, window_bounds = array<i64: 1, 128>}, {pipeline_mode = #tpu.pipeline_mode<synchronous>, transform_indices = @transform_3, window_bounds = array<i64: 1, 128>}, {pipeline_mode = #tpu.pipeline_mode<synchronous>, transform_indices = @transform_4, window_bounds = array<i64: 1, 128>}, {transform_indices = @transform_5, window_bounds = array<i64: 16, 128>}]} {
    %c0 = arith.constant 0 : index
    %c0_0 = arith.constant 0 : index
    %0 = vector.load %arg2[%c0, %c0_0] : memref<128x128xf32, #tpu.memory_space<vmem>>, vector<128x128xf32>
    %c0_1 = arith.constant 0 : index
    %c0_2 = arith.constant 0 : index
    %1 = vector.load %arg3[%c0_1, %c0_2] : memref<1x128xf32, #tpu.memory_space<vmem>>, vector<1x128xf32>
    %c0_3 = arith.constant 0 : index
    %c0_4 = arith.constant 0 : index
    %2 = vector.load %arg4[%c0_3, %c0_4] : memref<1x128xf32, #tpu.memory_space<vmem>>, vector<1x128xf32>
    %c0_5 = arith.constant 0 : index
    %c0_6 = arith.constant 0 : index
    %3 = vector.load %arg5[%c0_5, %c0_6] : memref<1x128xf32, #tpu.memory_space<vmem>>, vector<1x128xf32>
    %c0_7 = arith.constant 0 : index
    %c0_8 = arith.constant 0 : index
    %4 = vector.load %arg1[%c0_7, %c0_8] : memref<16x128xf32, #tpu.memory_space<vmem>>, vector<16x128xf32>
    %cst = arith.constant dense<0.000000e+00> : vector<16x128xf32>
    %5 = tpu.matmul %4, %0, %cst {dimension_numbers = #tpu.dot_dimension_numbers<[1], [1], [0], [0], [0, 0, 1, 0], [], []>} : vector<16x128xf32>, vector<128x128xf32>, vector<16x128xf32> -> vector<16x128xf32>
    %6 = vector.broadcast %1 : vector<1x128xf32> to vector<16x128xf32>
    %7 = arith.addf %5, %6 : vector<16x128xf32>
    %cst_9 = arith.constant 5.000000e-01 : f32
    %8 = vector.broadcast %cst_9 : f32 to vector<16x128xf32>
    %9 = arith.mulf %8, %7 : vector<16x128xf32>
    %cst_10 = arith.constant 0.707106769 : f32
    %10 = vector.broadcast %cst_10 : f32 to vector<16x128xf32>
    %11 = arith.mulf %7, %10 : vector<16x128xf32>
    %cst_11 = arith.constant 0.000000e+00 : f32
    %12 = vector.broadcast %cst_11 : f32 to vector<16x128xf32>
    %13 = arith.cmpf oge, %11, %12 : vector<16x128xf32>
    %cst_12 = arith.constant 1.000000e+00 : f32
    %cst_13 = arith.constant -1.000000e+00 : f32
    %14 = vector.broadcast %cst_12 : f32 to vector<16x128xf32>
    %15 = vector.broadcast %cst_13 : f32 to vector<16x128xf32>
    %16 = arith.select %13, %14, %15 : vector<16x128xi1>, vector<16x128xf32>
    %17 = math.absf %11 : vector<16x128xf32>
    %cst_14 = arith.constant 0.327591091 : f32
    %18 = vector.broadcast %cst_14 : f32 to vector<16x128xf32>
    %19 = arith.mulf %18, %17 : vector<16x128xf32>
    %cst_15 = arith.constant 1.000000e+00 : f32
    %20 = vector.broadcast %cst_15 : f32 to vector<16x128xf32>
    %21 = arith.addf %20, %19 : vector<16x128xf32>
    %cst_16 = arith.constant 1.000000e+00 : f32
    %22 = vector.broadcast %cst_16 : f32 to vector<16x128xf32>
    %23 = arith.divf %22, %21 : vector<16x128xf32>
    %cst_17 = arith.constant 1.06140542 : f32
    %24 = vector.broadcast %cst_17 : f32 to vector<16x128xf32>
    %25 = arith.mulf %24, %23 : vector<16x128xf32>
    %cst_18 = arith.constant -1.45315206 : f32
    %26 = vector.broadcast %cst_18 : f32 to vector<16x128xf32>
    %27 = arith.addf %25, %26 : vector<16x128xf32>
    %28 = arith.mulf %27, %23 : vector<16x128xf32>
    %cst_19 = arith.constant 1.42141378 : f32
    %29 = vector.broadcast %cst_19 : f32 to vector<16x128xf32>
    %30 = arith.addf %28, %29 : vector<16x128xf32>
    %31 = arith.mulf %30, %23 : vector<16x128xf32>
    %cst_20 = arith.constant -0.284496725 : f32
    %32 = vector.broadcast %cst_20 : f32 to vector<16x128xf32>
    %33 = arith.addf %31, %32 : vector<16x128xf32>
    %34 = arith.mulf %33, %23 : vector<16x128xf32>
    %cst_21 = arith.constant 0.254829586 : f32
    %35 = vector.broadcast %cst_21 : f32 to vector<16x128xf32>
    %36 = arith.addf %34, %35 : vector<16x128xf32>
    %37 = arith.mulf %36, %23 : vector<16x128xf32>
    %cst_22 = arith.constant 0.000000e+00 : f32
    %38 = vector.broadcast %cst_22 : f32 to vector<16x128xf32>
    %39 = arith.subf %38, %17 : vector<16x128xf32>
    %40 = arith.mulf %39, %17 : vector<16x128xf32>
    %41 = math.exp %40 : vector<16x128xf32>
    %42 = arith.mulf %37, %41 : vector<16x128xf32>
    %cst_23 = arith.constant 1.000000e+00 : f32
    %43 = vector.broadcast %cst_23 : f32 to vector<16x128xf32>
    %44 = arith.subf %43, %42 : vector<16x128xf32>
    %45 = arith.mulf %16, %44 : vector<16x128xf32>
    %cst_24 = arith.constant 1.000000e+00 : f32
    %46 = vector.broadcast %cst_24 : f32 to vector<16x128xf32>
    %47 = arith.addf %46, %45 : vector<16x128xf32>
    %48 = arith.mulf %9, %47 : vector<16x128xf32>
    %cst_25 = arith.constant dense<0.000000e+00> : vector<16xf32>
    %49 = vector.multi_reduction <add>, %48, %cst_25 [1] : vector<16x128xf32> to vector<16xf32>
    %50 = vector.shape_cast %49 : vector<16xf32> to vector<16x1xf32>
    %51 = arith.mulf %48, %48 : vector<16x128xf32>
    %cst_26 = arith.constant dense<0.000000e+00> : vector<16xf32>
    %52 = vector.multi_reduction <add>, %51, %cst_26 [1] : vector<16x128xf32> to vector<16xf32>
    %53 = vector.shape_cast %52 : vector<16xf32> to vector<16x1xf32>
    %cst_27 = arith.constant 3.125000e-02 : f32
    %54 = vector.broadcast %cst_27 : f32 to vector<16x1xf32>
    %55 = arith.mulf %50, %54 : vector<16x1xf32>
    %cst_28 = arith.constant 3.125000e-02 : f32
    %56 = vector.broadcast %cst_28 : f32 to vector<16x1xf32>
    %57 = arith.mulf %53, %56 : vector<16x1xf32>
    %58 = arith.mulf %55, %55 : vector<16x1xf32>
    %59 = arith.subf %57, %58 : vector<16x1xf32>
    %cst_29 = arith.constant 9.99999996E-13 : f32
    %60 = vector.broadcast %cst_29 : f32 to vector<16x1xf32>
    %61 = arith.addf %59, %60 : vector<16x1xf32>
    %62 = math.rsqrt %61 : vector<16x1xf32>
    %63 = vector.broadcast %55 : vector<16x1xf32> to vector<16x128xf32>
    %64 = arith.subf %48, %63 : vector<16x128xf32>
    %65 = vector.broadcast %62 : vector<16x1xf32> to vector<16x128xf32>
    %66 = arith.mulf %64, %65 : vector<16x128xf32>
    %67 = vector.broadcast %2 : vector<1x128xf32> to vector<16x128xf32>
    %68 = arith.mulf %66, %67 : vector<16x128xf32>
    %69 = vector.broadcast %3 : vector<1x128xf32> to vector<16x128xf32>
    %70 = arith.addf %68, %69 : vector<16x128xf32>
    %c0_30 = arith.constant 0 : index
    %c0_31 = arith.constant 0 : index
    %71 = vector.load %arg6[%c0_30, %c0_31] : memref<16x128xf32, #tpu.memory_space<vmem>>, vector<16x128xf32>
    tpu.vector_store %arg6[%c0_30, %c0_31], %70 {strides = array<i32>} : memref<16x128xf32, #tpu.memory_space<vmem>>, vector<16x128xf32>,
    return
  }
  func.func @transform_0(%arg0: i32) -> (i32, i32) {
    %c0_i32 = arith.constant 0 : i32
    %c0_i32_0 = arith.constant 0 : i32
    return %arg0, %c0_i32 : i32, i32
  }
  func.func @transform_1(%arg0: i32) -> (i32, i32) {
    %c0_i32 = arith.constant 0 : i32
    %c0_i32_0 = arith.constant 0 : i32
    %c0_i32_1 = arith.constant 0 : i32
    return %c0_i32, %c0_i32_0 : i32, i32
  }
  func.func @transform_2(%arg0: i32) -> (i32, i32) {
    %c0_i32 = arith.constant 0 : i32
    %c0_i32_0 = arith.constant 0 : i32
    %c0_i32_1 = arith.constant 0 : i32
    return %c0_i32, %c0_i32_0 : i32, i32
  }
  func.func @transform_3(%arg0: i32) -> (i32, i32) {
    %c0_i32 = arith.constant 0 : i32
    %c0_i32_0 = arith.constant 0 : i32
    %c0_i32_1 = arith.constant 0 : i32
    return %c0_i32, %c0_i32_0 : i32, i32
  }
  func.func @transform_4(%arg0: i32) -> (i32, i32) {
    %c0_i32 = arith.constant 0 : i32
    %c0_i32_0 = arith.constant 0 : i32
    %c0_i32_1 = arith.constant 0 : i32
    return %c0_i32, %c0_i32_0 : i32, i32
  }
  func.func @transform_5(%arg0: i32) -> (i32, i32) {
    %c0_i32 = arith.constant 0 : i32
    %c0_i32_0 = arith.constant 0 : i32
    return %arg0, %c0_i32 : i32, i32
  }
}

</mosaic_0001>

<llo_original>
// kernel: tpu_custom_call.1
$region0: #{tpu_custom_call.1}
  #allocation0 [shape = 'u32[]', space=smem, size = 0x4, offset = 0x4, fixed_abs, tag = 'smem constant byte address 0x4 - core index']
  #allocation1 [shape = 'u32[144,128]{1,0:T(1,128)}', space=vmem, size = 0x12000, scoped, tag = 'internal scratch']
  %s0 = inlined_call_operand.hbm [shape: f32[16,128], index: 0, kind: input, shape index: {}]
  %s1 = inlined_call_operand.hbm [shape: f32[128,128], index: 1, kind: input, shape index: {}]
  %s2 = inlined_call_operand.vmem [shape: f32[1,128], index: 2, kind: input, shape index: {}]
  %s3 = inlined_call_operand.vmem [shape: f32[1,128], index: 3, kind: input, shape index: {}]
  %s4 = inlined_call_operand.vmem [shape: f32[1,128], index: 4, kind: input, shape index: {}]
  %s5 = inlined_call_operand.hbm [shape: f32[16,128], index: 5, kind: output, shape index: {}]
  %s6 = sld [smem:[#allocation0]]
  $region38: #{tpu_custom_call.1} parent=0
    _
  %s8 = ssub.s32 1, %s6
  %s9 = scalar_select 0, %s8, %s6
  $region1: #{tpu_custom_call.1} parent=0
    #allocation2 [shape = 'u8[8192]{0}', space=vmem, size = 0x2000, scoped, tag = 'input window, operand 0, single buffered']
    #allocation3 [shape = 's32[1]{0}', space=sflag, size = 0x4, scoped, tag = 'scoped memory for tpu_custom_call.1']
    #allocation4 [shape = 's32[1]{0}', space=sflag, size = 0x4, scoped, tag = 'scoped memory for tpu_custom_call.1']
    #allocation5 [shape = 'u8[65536]{0}', space=vmem, size = 0x10000, scoped, tag = 'input window, operand 1, single buffered']
    #allocation6 [shape = 's32[1]{0}', space=sflag, size = 0x4, scoped, tag = 'scoped memory for tpu_custom_call.1']
    #allocation7 [shape = 'u8[8192]{0}', space=vmem, size = 0x2000, scoped, tag = 'output window, operand 0, single buffered']
    %10 = vsyncpa [#allocation3], 0
    %11 = vsyncpa [#allocation6], 0
    %12 = vsyncpa [#allocation4], 0
    // Predicated region
    $region2: #{tpu_custom_call.1} parent=1 // pred_check
      _
    $region3: #{tpu_custom_call.1} parent=1 // pred_check_branch
      %14 = sbr.rel (0) target = $region5
    $region4: #{tpu_custom_call.1} parent=1 // pred_region
      %s16 = ssub.s32 256, 256
      %17 = vsyncadd [#allocation3], %s16
      %s18 = sshll.u32 [#allocation2], 4
      %s19 = int_to_ptr.vmem [resolvable:$true] %s18
      %24 = dma.hbm_to_vmem [thread:$0]  %s0, 256, %s19, [#allocation3], 128, 128, 8
    $region5: #{tpu_custom_call.1} parent=1 // pred_fallthru
      _
    // Predicated region
    $region6: #{tpu_custom_call.1} parent=1 // pred_check
      _
    $region7: #{tpu_custom_call.1} parent=1 // pred_check_branch
      %26 = sbr.rel (0) target = $region9
    $region8: #{tpu_custom_call.1} parent=1 // pred_region
      %s28 = ssub.s32 2048, 2048
      %29 = vsyncadd [#allocation6], %s28
      %s30 = sshll.u32 [#allocation5], 4
      %s31 = int_to_ptr.vmem [resolvable:$true] %s30
      %36 = dma.hbm_to_vmem [thread:$0]  %s1, 2048, %s31, [#allocation6], 128, 128, 8
    $region9: #{tpu_custom_call.1} parent=1 // pred_fallthru
      _
    // Predicated region
    $region10: #{tpu_custom_call.1} parent=1 // pred_check
      _
    $region11: #{tpu_custom_call.1} parent=1 // pred_check_branch
      %38 = sbr.rel (0) target = $region13
    $region12: #{tpu_custom_call.1} parent=1 // pred_region
      _
    $region13: #{tpu_custom_call.1} parent=1 // pred_fallthru
      _
    // Predicated region
    $region14: #{tpu_custom_call.1} parent=1 // pred_check
      _
    $region15: #{tpu_custom_call.1} parent=1 // pred_check_branch
      %40 = sbr.rel (0) target = $region17
    $region16: #{tpu_custom_call.1} parent=1 // pred_region
      _
    $region17: #{tpu_custom_call.1} parent=1 // pred_fallthru
      _
    // Predicated region
    $region18: #{tpu_custom_call.1} parent=1 // pred_check
      _
    $region19: #{tpu_custom_call.1} parent=1 // pred_check_branch
      %42 = sbr.rel (0) target = $region21
    $region20: #{tpu_custom_call.1} parent=1 // pred_region
      _
    $region21: #{tpu_custom_call.1} parent=1 // pred_fallthru
      _
    // Predicated region
    $region22: #{tpu_custom_call.1} parent=1 // pred_check
      _
    $region23: #{tpu_custom_call.1} parent=1 // pred_check_branch
      %44 = sbr.rel (0) target = $region25
    $region24: #{tpu_custom_call.1} parent=1 // pred_region
      %45 = dma.done [#allocation3], 256
    $region25: #{tpu_custom_call.1} parent=1 // pred_fallthru
      _
    // Predicated region
    $region26: #{tpu_custom_call.1} parent=1 // pred_check
      _
    $region27: #{tpu_custom_call.1} parent=1 // pred_check_branch
      %47 = sbr.rel (0) target = $region29
    $region28: #{tpu_custom_call.1} parent=1 // pred_region
      %48 = dma.done [#allocation6], 2048
    $region29: #{tpu_custom_call.1} parent=1 // pred_fallthru
      _
    %v49 = vld [vmem:[#allocation5] sm:$0xff]
    %v50 = vld [vmem:[#allocation5 + $0x8] sm:$0xff]
    %v51 = vld [vmem:[#allocation5 + $0x10] sm:$0xff]
    %v52 = vld [vmem:[#allocation5 + $0x18] sm:$0xff]
    %v53 = vld [vmem:[#allocation5 + $0x20] sm:$0xff]
    %v54 = vld [vmem:[#allocation5 + $0x28] sm:$0xff]
    %v55 = vld [vmem:[#allocation5 + $0x30] sm:$0xff]
    %v56 = vld [vmem:[#allocation5 + $0x38] sm:$0xff]
    %v57 = vld [vmem:[#allocation5 + $0x40] sm:$0xff]
    %v58 = vld [vmem:[#allocation5 + $0x48] sm:$0xff]
    %v59 = vld [vmem:[#allocation5 + $0x50] sm:$0xff]
    %v60 = vld [vmem:[#allocation5 + $0x58] sm:$0xff]
    %v61 = vld [vmem:[#allocation5 + $0x60] sm:$0xff]
    %v62 = vld [vmem:[#allocation5 + $0x68] sm:$0xff]
    %v63 = vld [vmem:[#allocation5 + $0x70] sm:$0xff]
    %v64 = vld [vmem:[#allocation5 + $0x78] sm:$0xff]
    %v65 = vld [vmem:[%s2] sm:$0x1]
    %v66 = vld [vmem:[%s3] sm:$0x1]
    %v67 = vld [vmem:[%s4] sm:$0x1]
    %v68 = vld [vmem:[#allocation2] sm:$0xff]
    %v69 = vld [vmem:[#allocation2 + $0x8] sm:$0xff]
    %v71 = vlaneseq
    %v72 = vshrl.u32 %v71, 7
    %v73 = vsub.s32 0, %v72
    %v74 = vrot.slane %v65, %v73
    %76 = vmatprep.subr.mxu0 0.0
    %77 = vmatpush1.xpose.msra.mxu0 %v64
    %78 = vmatprep.subr.mxu0 0.0
    %79 = vmatpush1.xpose.msra.mxu0 %v63
    %80 = vmatprep.subr.mxu0 0.0
    %81 = vmatpush1.xpose.msra.mxu0 %v62
    %82 = vmatprep.subr.mxu0 0.0
    %83 = vmatpush1.xpose.msra.mxu0 %v61
    %84 = vmatprep.subr.mxu0 0.0
    %85 = vmatpush1.xpose.msra.mxu0 %v60
    %86 = vmatprep.subr.mxu0 0.0
    %87 = vmatpush1.xpose.msra.mxu0 %v59
    %88 = vmatprep.subr.mxu0 0.0
    %89 = vmatpush1.xpose.msra.mxu0 %v58
    %90 = vmatprep.subr.mxu0 0.0
    %91 = vmatpush1.xpose.msra.mxu0 %v57
    %92 = vmatprep.subr.mxu0 0.0
    %93 = vmatpush1.xpose.msra.mxu0 %v56
    %94 = vmatprep.subr.mxu0 0.0
    %95 = vmatpush1.xpose.msra.mxu0 %v55
    %96 = vmatprep.subr.mxu0 0.0
    %97 = vmatpush1.xpose.msra.mxu0 %v54
    %98 = vmatprep.subr.mxu0 0.0
    %99 = vmatpush1.xpose.msra.mxu0 %v53
    %100 = vmatprep.subr.mxu0 0.0
    %101 = vmatpush1.xpose.msra.mxu0 %v52
    %102 = vmatprep.subr.mxu0 0.0
    %103 = vmatpush1.xpose.msra.mxu0 %v51
    %104 = vmatprep.subr.mxu0 0.0
    %105 = vmatpush1.xpose.msra.mxu0 %v50
    %106 = vmatprep.subr.mxu0 0.0
    %107 = vmatpush1.xpose.msra.mxu0 %v49
    %108 = vmatprep.subr.mxu0 0.0
    %109 = vmatpush2.xpose.msra.mxu0 0.0
    %110 = vmatprep.subr.mxu0 0.0
    %111 = vmatpush2.xpose.msra.mxu0 0.0
    %112 = vmatprep.subr.mxu0 0.0
    %113 = vmatpush2.xpose.msra.mxu0 0.0
    %114 = vmatprep.subr.mxu0 0.0
    %115 = vmatpush2.xpose.msra.mxu0 0.0
    %116 = vmatprep.subr.mxu0 0.0
    %117 = vmatpush2.xpose.msra.mxu0 0.0
    %118 = vmatprep.subr.mxu0 0.0
    %119 = vmatpush2.xpose.msra.mxu0 0.0
    %120 = vmatprep.subr.mxu0 0.0
    %121 = vmatpush2.xpose.msra.mxu0 0.0
    %122 = vmatprep.subr.mxu0 0.0
    %123 = vmatpush2.xpose.msra.mxu0 0.0
    %124 = vmatprep.subr.mxu0 0.0
    %125 = vmatpush2.xpose.msra.mxu0 0.0
    %126 = vmatprep.subr.mxu0 0.0
    %127 = vmatpush2.xpose.msra.mxu0 0.0
    %128 = vmatprep.subr.mxu0 0.0
    %129 = vmatpush2.xpose.msra.mxu0 0.0
    %130 = vmatprep.subr.mxu0 0.0
    %131 = vmatpush2.xpose.msra.mxu0 0.0
    %132 = vmatprep.subr.mxu0 0.0
    %133 = vmatpush2.xpose.msra.mxu0 0.0
    %134 = vmatprep.subr.mxu0 0.0
    %135 = vmatpush2.xpose.msra.mxu0 0.0
    %136 = vmatprep.subr.mxu0 0.0
    %137 = vmatpush2.xpose.msra.mxu0 0.0
    %138 = vmatprep.subr.mxu0 0.0
    %139 = vmatpush2.xpose.msra.mxu0 0.0
    %140 = vmatprep.mubr.f32.mxu0 0.0
    %141 = vmatmul.mubr.f32.gmra.mxu0 %v68
    %v142 = vpop.f32.mrf.mxu0
    %v143 = vadd.f32 %v74, %v142
    %v144 = vpop.f32.mrf.mxu0
    %145 = vmatprep.mubr.f32.mxu0 0.0
    %146 = vmatmul.mubr.f32.gmra.mxu0 %v69
    %v147 = vpop.f32.mrf.mxu0
    %v148 = vadd.f32 %v74, %v147
    %v149 = vpop.f32.mrf.mxu0
    %150 = vdwg.mxu0
    %v151 = vmul.f32 %v143, 0.5
    %v152 = vmul.f32 %v148, 0.5
    %v153 = vmul.f32 %v143, 0.70710677
    %v154 = vmul.f32 %v148, 0.70710677
    %vm155 = vcmp.ge.f32.partialorder %v153, 0.0
    %vm156 = vcmp.ge.f32.partialorder %v154, 0.0
    %v157 = vsel %vm155, 1.0, -1.0
    %v158 = vsel %vm156, 1.0, -1.0
    %v159 = vand.u32 2147483647, %v153
    %v160 = vand.u32 2147483647, %v154
    %v161 = vmul.f32 %v159, 0.3275911
    %v162 = vmul.f32 %v160, 0.3275911
    %v163 = vadd.f32 %v161, 1.0
    %v164 = vadd.f32 %v162, 1.0
    %v165 = vrcp.pop %v163
    %v166 = vmul.f32 1.0, %v165
    %v167 = vrcp.pop %v164
    %v168 = vmul.f32 1.0, %v167
    %v169 = vmul.f32 %v166, 1.0614054
    %v170 = vmul.f32 %v168, 1.0614054
    %v171 = vadd.f32 %v169, -1.4531521
    %v172 = vadd.f32 %v170, -1.4531521
    %v173 = vmul.f32 %v171, %v166
    %v174 = vmul.f32 %v172, %v168
    %v175 = vadd.f32 %v173, 1.4214138
    %v176 = vadd.f32 %v174, 1.4214138
    %v177 = vmul.f32 %v175, %v166
    %v178 = vmul.f32 %v176, %v168
    %v179 = vadd.f32 %v177, -0.28449672
    %v180 = vadd.f32 %v178, -0.28449672
    %v181 = vmul.f32 %v179, %v166
    %v182 = vmul.f32 %v180, %v168
    %v183 = vadd.f32 %v181, 0.2548296
    %v184 = vadd.f32 %v182, 0.2548296
    %v185 = vmul.f32 %v183, %v166
    %v186 = vmul.f32 %v184, %v168
    %v187 = vsub.f32 0.0, %v159
    %v188 = vsub.f32 0.0, %v160
    %v189 = vmul.f32 %v187, %v159
    %v190 = vmul.f32 %v188, %v160
    %v191 = vmul.f32 %v189, 1.442695
    %v192 = vpow.pop %v191
    %v193 = vmul.f32 %v190, 1.442695
    %v194 = vpow.pop %v193
    %v195 = vmul.f32 %v185, %v192
    %v196 = vmul.f32 %v186, %v194
    %v197 = vsub.f32 1.0, %v195
    %v198 = vsub.f32 1.0, %v196
    %v199 = vmul.f32 %v157, %v197
    %v200 = vmul.f32 %v158, %v198
    %v201 = vadd.f32 %v199, 1.0
    %v202 = vadd.f32 %v200, 1.0
    %v203 = vmul.f32 %v151, %v201
    %v204 = vmul.f32 %v152, %v202
    %205 = vadd.xlane.f32.xlu0 %v203
    %v206 = vpop.xlane.xlu0 %205
    %207 = vadd.xlane.f32.xlu0 %v204
    %v208 = vpop.xlane.xlu0 %207
    %v209 = vmul.f32 %v203, %v203
    %v210 = vmul.f32 %v204, %v204
    %211 = vadd.xlane.f32.xlu0 %v209
    %v212 = vpop.xlane.xlu0 %211
    %213 = vadd.xlane.f32.xlu0 %v210
    %v214 = vpop.xlane.xlu0 %213
    %v215 = vmul.f32 %v206, 0.03125
    %v216 = vmul.f32 %v208, 0.03125
    %v217 = vmul.f32 %v212, 0.03125
    %v218 = vmul.f32 %v214, 0.03125
    %v219 = vmul.f32 %v215, %v215
    %v220 = vmul.f32 %v216, %v216
    %v221 = vsub.f32 %v217, %v219
    %v222 = vsub.f32 %v218, %v220
    %v223 = vadd.f32 %v221, 1e-12
    %v224 = vadd.f32 %v222, 1e-12
    %v225 = vrsqrt.pop %v223
    %v226 = vrsqrt.pop %v224
    %v227 = vsub.f32 %v203, %v215
    %v228 = vsub.f32 %v204, %v216
    %v229 = vmul.f32 %v227, %v225
    %v230 = vmul.f32 %v228, %v226
    %v232 = vlaneseq
    %v233 = vshrl.u32 %v232, 7
    %v234 = vsub.s32 0, %v233
    %v235 = vrot.slane %v66, %v234
    %v237 = vmul.f32 %v229, %v235
    %v238 = vmul.f32 %v230, %v235
    %v240 = vlaneseq
    %v241 = vshrl.u32 %v240, 7
    %v242 = vsub.s32 0, %v241
    %v243 = vrot.slane %v67, %v242
    %v245 = vadd.f32 %v237, %v243
    %v246 = vadd.f32 %v238, %v243
    %247 = vst [vmem:[#allocation7] sm:$0xff] %v245
    %248 = vst [vmem:[#allocation7 + $0x8] sm:$0xff] %v246
    // Predicated region
    $region30: #{tpu_custom_call.1} parent=1 // pred_check
      _
    $region31: #{tpu_custom_call.1} parent=1 // pred_check_branch
      %250 = sbr.rel (0) target = $region33
    $region32: #{tpu_custom_call.1} parent=1 // pred_region
      %s252 = ssub.s32 256, 256
      %253 = vsyncadd [#allocation4], %s252
      %s254 = sshll.u32 [#allocation7], 4
      %s255 = int_to_ptr.vmem [resolvable:$true] %s254
      %260 = dma.vmem_to_hbm [thread:$0]  %s255, 256, %s5, [#allocation4], 128, 128, 8
    $region33: #{tpu_custom_call.1} parent=1 // pred_fallthru
      _
    // Predicated region
    $region34: #{tpu_custom_call.1} parent=1 // pred_check
      _
    $region35: #{tpu_custom_call.1} parent=1 // pred_check_branch
      %262 = sbr.rel (0) target = $region37
    $region36: #{tpu_custom_call.1} parent=1 // pred_region
      %263 = dma.done [#allocation4], 256
    $region37: #{tpu_custom_call.1} parent=1 // pred_fallthru
      _
    %264 = vsyncpa [#allocation3], 1
    %265 = vsyncpa [#allocation6], 1
    %266 = vsyncpa [#allocation4], 1

</llo_original>
